<compile_context>
chip_gen: v7x
topology: tpu7x:2x2x1
jax: 0.10.0
libtpu: 0.0.40
codegen_flags: <defaults>
</compile_context>

<pallas_src>
import math
from functools import partial

import numpy as np
import jax
import jax.numpy as jnp
from jax import lax
from jax.experimental import pallas as pl
from jax.experimental.pallas import tpu as pltpu


# --------------------------------------------------------------------------- #
# Host-side parameter setup (exact scipy.ndimage Gaussian taps, mode='wrap')
# --------------------------------------------------------------------------- #
def calc_sigma(time, diff_coeff):
    return np.sqrt(2.0 * diff_coeff * time)


def _gaussian_kernel1d(sigma, truncate=4.0):
    """Identical to scipy.ndimage._gaussian_kernel1d (order=0)."""
    radius = int(truncate * float(sigma) + 0.5)
    xs = np.arange(-radius, radius + 1, dtype=np.float64)
    phi = np.exp(-0.5 / (float(sigma) ** 2) * xs ** 2)
    phi /= phi.sum()
    return phi, radius


def _circulant_blur_matrix(sigma, n, truncate=4.0):
    """A (n,n) float64 such that A @ v == gaussian_filter1d(v, sigma, mode='wrap')."""
    w, r = _gaussian_kernel1d(sigma, truncate)
    c = np.zeros(n, dtype=np.float64)
    for j, wj in enumerate(w):
        c[(j - r) % n] += wj                                   # wrap via modulo
    idx = (np.arange(n)[None, :] - np.arange(n)[:, None]) % n  # A[i,k] = c[(k-i)%n]
    return c[idx]


# --------------------------------------------------------------------------- #
# Hardware-aware sizing helpers
# --------------------------------------------------------------------------- #
def _lane_target():
    """Target matmul width: 256 lanes on v6e/v7x (256-wide MXU), else 128."""
    try:
        kind = jax.devices()[0].device_kind.lower()
    except Exception:
        return 256
    return 256 if ("v6" in kind or "v7" in kind) else 128


def _fold_factor(w, lane_target, batch):
    """How many images to fold into the lane dim of one grid step (1 if W >= 128)."""
    if w >= 128:
        return 1
    g_unit = 128 // math.gcd(w, 128)                 # smallest G with (G*w) % 128 == 0
    fold = g_unit * max(1, lane_target // (g_unit * w))
    fold = min(fold, g_unit * (-(-batch // g_unit)))  # don't fold far past the batch
    return max(fold, g_unit)


def _vmem_cap_bytes():
    cap = 128 << 20
    try:
        cap = int(getattr(pltpu.get_tpu_info(), "vmem_capacity_bytes", cap))
    except Exception:
        pass
    return (cap * 3) // 4        # ~48 MiB on v7x (64 MiB), ~96 MiB on v5e/v6e (128 MiB)


def _compiler_params(h, lanes, a_elems, x_item, out_item):
    blk = h * lanes
    per_buf = blk * x_item + blk * out_item + a_elems * 2       # bf16 blur matrices
    interm = blk * (4 + 4 + 2 + 2)                              # f32 t/z + bf16 recasts
    needed = 2 * per_buf + interm + (8 << 20)                   # double-buffered + slack
    limit = int(min(_vmem_cap_bytes(), max(32 << 20, needed)))
    # TODO(synk): for very large images (H=W >~ 1.2k on v7x) switch to a row-slab x
    # col-slab tiled grid instead of whole-image blocks so the working set stays in VMEM.
    return pltpu.CompilerParams(dimension_semantics=("parallel",),
                                vmem_limit_bytes=limit)


# --------------------------------------------------------------------------- #
# Kernels: per grid step   out = A_row @ x @ A_col^T   (two MXU matmuls)
# --------------------------------------------------------------------------- #
def _apply_blur(a_ref, second_ref, x_ref, o_ref):
    a = a_ref[0]                               # (H, H) blur matrix, compute dtype (bf16)
    xv = x_ref[0].astype(a.dtype)              # in-kernel cast: f32 HBM block -> bf16
    t = jnp.dot(a, xv, preferred_element_type=jnp.float32)          # row blur
    if second_ref is None:
        # H == W: reuse A; contract t's last dim with A's last dim (t @ A^T) on the MXU.
        z = lax.dot_general(t.astype(a.dtype), a, (((1,), (1,)), ((), ())),
                            preferred_element_type=jnp.float32)
    else:
        # second_ref holds A_W^T (pre-transposed on host), or its block-diagonal
        # replication when several images are folded into the lane dimension.
        z = jnp.dot(t.astype(a.dtype), second_ref[0],
                    preferred_element_type=jnp.float32)
    o_ref[0] = z.astype(o_ref.dtype)


def _kernel_single_shared(order_ref, steps_ref, a_ref, x_ref, o_ref):
    del order_ref, steps_ref                   # consumed only by BlockSpec index_maps
    _apply_blur(a_ref, None, x_ref, o_ref)


def _kernel_single(order_ref, steps_ref, a_ref, a2_ref, x_ref, o_ref):
    del order_ref, steps_ref
    _apply_blur(a_ref, a2_ref, x_ref, o_ref)


def _kernel_grouped(gsteps_ref, a_ref, a2_ref, x_ref, o_ref):
    del gsteps_ref
    _apply_blur(a_ref, a2_ref, x_ref, o_ref)


# --------------------------------------------------------------------------- #
# pallas_call wrappers
# --------------------------------------------------------------------------- #
@partial(jax.jit, static_argnames=("out_dtype",))
def _blur_single_shared(x, a_row, order, steps_sorted, *, out_dtype):
    """W >= 128, H == W: one image per grid step, visited in step-sorted order via
    scalar-prefetched index_maps; a single A feeds both matmuls."""
    B, H, W = x.shape
    grid_spec = pltpu.PrefetchScalarGridSpec(
        num_scalar_prefetch=2, grid=(B,),
        in_specs=[
            pl.BlockSpec((1, H, H), lambda b, o_r, s_r: (s_r[b], 0, 0)),
            pl.BlockSpec((1, H, W), lambda b, o_r, s_r: (o_r[b], 0, 0)),
        ],
        out_specs=pl.BlockSpec((1, H, W), lambda b, o_r, s_r: (o_r[b], 0, 0)),
    )
    return pl.pallas_call(
        _kernel_single_shared,
        out_shape=jax.ShapeDtypeStruct((B, H, W), out_dtype),
        grid_spec=grid_spec,
        compiler_params=_compiler_params(H, W, H * H, x.dtype.itemsize,
                                         jnp.dtype(out_dtype).itemsize),
    )(order, steps_sorted, a_row, x)


@partial(jax.jit, static_argnames=("out_dtype",))
def _blur_single(x, a_row, a_col_t, order, steps_sorted, *, out_dtype):
    """W >= 128, H != W: same as above but with a separate pre-transposed A_W^T."""
    B, H, W = x.shape
    grid_spec = pltpu.PrefetchScalarGridSpec(
        num_scalar_prefetch=2, grid=(B,),
        in_specs=[
            pl.BlockSpec((1, H, H), lambda b, o_r, s_r: (s_r[b], 0, 0)),
            pl.BlockSpec((1, W, W), lambda b, o_r, s_r: (s_r[b], 0, 0)),
            pl.BlockSpec((1, H, W), lambda b, o_r, s_r: (o_r[b], 0, 0)),
        ],
        out_specs=pl.BlockSpec((1, H, W), lambda b, o_r, s_r: (o_r[b], 0, 0)),
    )
    return pl.pallas_call(
        _kernel_single,
        out_shape=jax.ShapeDtypeStruct((B, H, W), out_dtype),
        grid_spec=grid_spec,
        compiler_params=_compiler_params(H, W, H * H + W * W, x.dtype.itemsize,
                                         jnp.dtype(out_dtype).itemsize),
    )(order, steps_sorted, a_row, a_col_t, x)


@partial(jax.jit, static_argnames=("fold", "out_dtype"))
def _blur_grouped(x, a_row, a_bd, src, group_steps, inv, *, fold, out_dtype):
    """W < 128: fold `fold` step-homogeneous images into the lane dimension so both
    matmuls are >=128 lanes wide and output stores are lane-dense."""
    B, H, W = x.shape
    n_groups = group_steps.shape[0]
    lanes = fold * W
    x_wide = (jnp.take(x, src, axis=0)
              .reshape(n_groups, fold, H, W)
              .transpose(0, 2, 1, 3)
              .reshape(n_groups, H, lanes))
    grid_spec = pltpu.PrefetchScalarGridSpec(
        num_scalar_prefetch=1, grid=(n_groups,),
        in_specs=[
            pl.BlockSpec((1, H, H), lambda g, s_r: (s_r[g], 0, 0)),
            pl.BlockSpec((1, lanes, lanes), lambda g, s_r: (s_r[g], 0, 0)),
            pl.BlockSpec((1, H, lanes), lambda g, s_r: (g, 0, 0)),
        ],
        out_specs=pl.BlockSpec((1, H, lanes), lambda g, s_r: (g, 0, 0)),
    )
    out_wide = pl.pallas_call(
        _kernel_grouped,
        out_shape=jax.ShapeDtypeStruct((n_groups, H, lanes), out_dtype),
        grid_spec=grid_spec,
        compiler_params=_compiler_params(H, lanes, H * H + lanes * lanes,
                                         x.dtype.itemsize, jnp.dtype(out_dtype).itemsize),
    )(group_steps, a_row, a_bd, x_wide)
    out_flat = (out_wide.reshape(n_groups, H, fold, W)
                .transpose(0, 2, 1, 3)
                .reshape(n_groups * fold, H, W))
    return jnp.take(out_flat, inv, axis=0)


# --------------------------------------------------------------------------- #
# Host-side grouping (sort by step, step-homogeneous groups padded to `fold`)
# --------------------------------------------------------------------------- #
def _build_groups(steps, fold):
    order = np.argsort(steps, kind="stable")
    src_chunks, group_steps = [], []
    b, B = 0, steps.shape[0]
    while b < B:
        k = steps[order[b]]
        e = b
        while e < B and steps[order[e]] == k:
            e += 1
        run = order[b:e]
        for c in range(0, run.size, fold):
            chunk = run[c:c + fold]
            if chunk.size < fold:   # pad by repeating the last image of the run
                chunk = np.concatenate(
                    [chunk, np.full(fold - chunk.size, chunk[-1], dtype=chunk.dtype)])
            src_chunks.append(chunk)
            group_steps.append(int(k))
        b = e
    src = np.concatenate(src_chunks).astype(np.int32)
    group_steps = np.asarray(group_steps, dtype=np.int32)
    inv = np.zeros(B, dtype=np.int32)
    seen = set()
    for pos, orig in enumerate(src):
        o = int(orig)
        if o not in seen:
            inv[o] = pos
            seen.add(o)
    return src, group_steps, inv


# --------------------------------------------------------------------------- #
# Module-equivalent wrapper
# --------------------------------------------------------------------------- #
class GaussianBlurLayerNaive:
    """JAX/Pallas port: per-batch wrap-mode Gaussian blur with a sigma schedule.

    x is (B, H, W).  Output defaults to float32 (module semantics); pass
    out_dtype=jnp.bfloat16 to halve the HBM writeback stream if tolerable.
    """

    def __init__(self, blur_sigmas, compute_dtype=jnp.bfloat16, out_dtype=jnp.float32):
        self.blur_sigmas = np.asarray(blur_sigmas, dtype=np.float64)
        self.compute_dtype = compute_dtype
        self.out_dtype = out_dtype
        self._base_cache = {}   # n -> (K, n, n) float64 circulant stack
        self._dev_cache = {}    # (kind, n, fold) -> device array (compute dtype)

    def _base(self, n):
        a = self._base_cache.get(n)
        if a is None:
            a = np.stack([_circulant_blur_matrix(s, n) for s in self.blur_sigmas])
            self._base_cache[n] = a
        return a

    def _a_row(self, n):
        key = ("row", n, 1)
        v = self._dev_cache.get(key)
        if v is None:
            # NOTE: bf16 rows no longer sum to exactly 1; use compute_dtype=f32 for
            # tighter parity with scipy at the cost of slower (multi-pass) MXU matmuls.
            v = jnp.asarray(self._base(n), dtype=self.compute_dtype)
            self._dev_cache[key] = v
        return v

    def _a_col_bd(self, n, fold):
        """(K, fold*n, fold*n): block-diagonal with `fold` copies of A^T (fold=1 -> A^T)."""
        key = ("col_bd", n, fold)
        v = self._dev_cache.get(key)
        if v is None:
            base_t = np.swapaxes(self._base(n), 1, 2)                 # (K, n, n) = A^T
            eye = np.eye(fold, dtype=np.float64)
            bd = np.einsum("gh,kij->kgihj", eye, base_t).reshape(
                len(self.blur_sigmas), fold * n, fold * n)
            v = jnp.asarray(bd, dtype=self.compute_dtype)
            self._dev_cache[key] = v
        return v

    def __call__(self, x, fwd_steps):
        x = jnp.asarray(x)
        assert x.ndim == 3, "expected (B, H, W); fold NCHW to (B*C, H, W) first"
        B, H, W = x.shape
        # Concrete host-side schedule indices (the reference module also consumes
        # them eagerly, one python iteration per batch element).
        steps = np.asarray(fwd_steps).astype(np.int32).reshape(-1)
        assert steps.shape[0] == B
        fold = _fold_factor(W, _lane_target(), B)

        if fold == 1:
            # Sort by step so runs of equal step skip the A DMA; the "sort" is applied
            # only through index_maps (x stays where it is, no extra HBM pass).
            order = np.argsort(steps, kind="stable").astype(np.int32)
            steps_sorted = steps[order]
            a_row = self._a_row(H)
            if H == W:
                return _blur_single_shared(x, a_row, order, steps_sorted,
                                           out_dtype=self.out_dtype)
            a_col_t = self._a_col_bd(W, 1)
            return _blur_single(x, a_row, a_col_t, order, steps_sorted,
                                out_dtype=self.out_dtype)

        # Small images: fold `fold` step-homogeneous images into the lane dimension.
        src, group_steps, inv = _build_groups(steps, fold)
        a_row = self._a_row(H)
        a_bd = self._a_col_bd(W, fold)
        return _blur_grouped(x, a_row, a_bd, jnp.asarray(src), jnp.asarray(group_steps),
                             jnp.asarray(inv), fold=fold, out_dtype=self.out_dtype)


if __name__ == "__main__":
    # Deterministic parameter setup (synthetic — mirrors the module's __init__ shapes).
    K = 8
    diffusivity0 = 20.0
    times = np.linspace(0.01, 0.5, K)                  # blur schedule
    blur_sigmas = calc_sigma(times, diffusivity0)      # (K,) sigmas
    layer = GaussianBlurLayerNaive(blur_sigmas)

    key_small, key_large = jax.random.split(jax.random.PRNGKey(0))

    # Small images (W < 128): exercises the batch-fold / lane-dense / block-diag path.
    B1, H1, W1 = 4, 16, 16
    x1 = jax.random.normal(key_small, (B1, H1, W1), dtype=jnp.float32)
    steps1 = np.array([3, 7, 3, 1], dtype=np.int64)
    out1 = jax.block_until_ready(layer(x1, steps1))
    assert out1.shape == (B1, H1, W1) and out1.dtype == jnp.float32

    # Spec-sized images (128x128): exercises the sorted per-image, shared-A path.
    B2, H2, W2 = 2, 128, 128
    x2 = jax.random.normal(key_large, (B2, H2, W2), dtype=jnp.float32)
    steps2 = np.array([5, 2], dtype=np.int64)
    out2 = jax.block_until_ready(layer(x2, steps2))
    assert out2.shape == (B2, H2, W2) and out2.dtype == jnp.float32

    # Reference: the same circulant wrap-blur formulation in float64 numpy.
    def ref_blur(x, steps):
        xs = np.asarray(x, dtype=np.float64)
        out = np.empty_like(xs)
        for i in range(xs.shape[0]):
            s = float(blur_sigmas[int(steps[i])])
            a_h = _circulant_blur_matrix(s, xs.shape[1])
            a_w = _circulant_blur_matrix(s, xs.shape[2])
            out[i] = a_h @ xs[i] @ a_w.T
        return out

    # bf16 MXU inputs with f32 accumulation -> loose-but-meaningful tolerance.
    np.testing.assert_allclose(np.asarray(out1, dtype=np.float64), ref_blur(x1, steps1),
                               rtol=2e-2, atol=2e-2)
    np.testing.assert_allclose(np.asarray(out2, dtype=np.float64), ref_blur(x2, steps2),
                               rtol=2e-2, atol=2e-2)
    print("KERNEL_OK")
</pallas_src>

<mosaic_0001>
module attributes {stable_mosaic.version = 11 : i64} {
  func.func @_kernel_grouped(%arg0: i32, %arg1: memref<3xi32, #tpu.memory_space<smem>>, %arg2: memref<1x16x16xbf16, #tpu.memory_space<vmem>>, %arg3: memref<1x128x128xbf16, #tpu.memory_space<vmem>>, %arg4: memref<1x16x128xf32, #tpu.memory_space<vmem>>, %arg5: memref<1x16x128xf32, #tpu.memory_space<vmem>>) attributes {dimension_semantics = [#tpu.dimension_semantics<parallel>], iteration_bounds = array<i64: 3>, scalar_prefetch = 1 : i64, scratch_operands = 0 : i64, tpu.core_type = #tpu.core_type<tc>, window_params = [{transform_indices = @transform_0, window_bounds = array<i64: 1, 16, 16>}, {transform_indices = @transform_1, window_bounds = array<i64: 1, 128, 128>}, {transform_indices = @transform_2, window_bounds = array<i64: 1, 16, 128>}, {transform_indices = @transform_3, window_bounds = array<i64: 1, 16, 128>}]} {
    %c0 = arith.constant 0 : index
    %c0_0 = arith.constant 0 : index
    %c0_1 = arith.constant 0 : index
    %0 = vector.load %arg2[%c0, %c0_0, %c0_1] : memref<1x16x16xbf16, #tpu.memory_space<vmem>>, vector<1x16x16xbf16>
    %1 = vector.shape_cast %0 : vector<1x16x16xbf16> to vector<16x16xbf16>
    %c0_2 = arith.constant 0 : index
    %c0_3 = arith.constant 0 : index
    %c0_4 = arith.constant 0 : index
    %2 = vector.load %arg4[%c0_2, %c0_3, %c0_4] : memref<1x16x128xf32, #tpu.memory_space<vmem>>, vector<1x16x128xf32>
    %3 = vector.shape_cast %2 : vector<1x16x128xf32> to vector<16x128xf32>
    %4 = arith.truncf %3 : vector<16x128xf32> to vector<16x128xbf16>
    %cst = arith.constant dense<0.000000e+00> : vector<16x128xf32>
    %5 = tpu.matmul %1, %4, %cst {dimension_numbers = #tpu.dot_dimension_numbers<[1], [0], [0], [1], [0, 0, 1, 1], [], []>} : vector<16x16xbf16>, vector<16x128xbf16>, vector<16x128xf32> -> vector<16x128xf32>
    %6 = arith.truncf %5 : vector<16x128xf32> to vector<16x128xbf16>
    %c0_5 = arith.constant 0 : index
    %c0_6 = arith.constant 0 : index
    %c0_7 = arith.constant 0 : index
    %7 = vector.load %arg3[%c0_5, %c0_6, %c0_7] : memref<1x128x128xbf16, #tpu.memory_space<vmem>>, vector<1x128x128xbf16>
    %8 = vector.shape_cast %7 : vector<1x128x128xbf16> to vector<128x128xbf16>
    %cst_8 = arith.constant dense<0.000000e+00> : vector<16x128xf32>
    %9 = tpu.matmul %6, %8, %cst_8 {dimension_numbers = #tpu.dot_dimension_numbers<[1], [0], [0], [1], [0, 0, 1, 1], [], []>} : vector<16x128xbf16>, vector<128x128xbf16>, vector<16x128xf32> -> vector<16x128xf32>
    %c0_9 = arith.constant 0 : index
    %c0_10 = arith.constant 0 : index
    %c0_11 = arith.constant 0 : index
    %10 = vector.load %arg5[%c0_9, %c0_10, %c0_11] : memref<1x16x128xf32, #tpu.memory_space<vmem>>, vector<1x16x128xf32>
    %11 = vector.shape_cast %10 : vector<1x16x128xf32> to vector<16x128xf32>
    %12 = vector.shape_cast %9 : vector<16x128xf32> to vector<1x16x128xf32>
    tpu.vector_store %arg5[%c0_9, %c0_10, %c0_11], %12 {strides = array<i32>} : memref<1x16x128xf32, #tpu.memory_space<vmem>>, vector<1x16x128xf32>,
    return
  }
  func.func @transform_0(%arg0: i32, %arg1: memref<3xi32, #tpu.memory_space<smem>>) -> (i32, i32, i32) {
    %0 = arith.index_cast %arg0 : i32 to index
    %1 = memref.load %arg1[%0] : memref<3xi32, #tpu.memory_space<smem>>
    %c0_i32 = arith.constant 0 : i32
    %c0_i32_0 = arith.constant 0 : i32
    %c0_i32_1 = arith.constant 0 : i32
    return %1, %c0_i32, %c0_i32_0 : i32, i32, i32
  }
  func.func @transform_1(%arg0: i32, %arg1: memref<3xi32, #tpu.memory_space<smem>>) -> (i32, i32, i32) {
    %0 = arith.index_cast %arg0 : i32 to index
    %1 = memref.load %arg1[%0] : memref<3xi32, #tpu.memory_space<smem>>
    %c0_i32 = arith.constant 0 : i32
    %c0_i32_0 = arith.constant 0 : i32
    %c0_i32_1 = arith.constant 0 : i32
    return %1, %c0_i32, %c0_i32_0 : i32, i32, i32
  }
  func.func @transform_2(%arg0: i32, %arg1: memref<3xi32, #tpu.memory_space<smem>>) -> (i32, i32, i32) {
    %c0_i32 = arith.constant 0 : i32
    %c0_i32_0 = arith.constant 0 : i32
    %c0_i32_1 = arith.constant 0 : i32
    return %arg0, %c0_i32, %c0_i32_0 : i32, i32, i32
  }
  func.func @transform_3(%arg0: i32, %arg1: memref<3xi32, #tpu.memory_space<smem>>) -> (i32, i32, i32) {
    %c0_i32 = arith.constant 0 : i32
    %c0_i32_0 = arith.constant 0 : i32
    %c0_i32_1 = arith.constant 0 : i32
    return %arg0, %c0_i32, %c0_i32_0 : i32, i32, i32
  }
}

</mosaic_0001>

<llo_original>
// kernel: _blur_grouped.1
$region0: #{_blur_grouped.1}
  #allocation0 [shape = 'u32[]', space=smem, size = 0x4, offset = 0x4, fixed_abs, tag = 'smem constant byte address 0x4 - core index']
  #allocation1 [shape = 'u32[144,128]{1,0:T(1,128)}', space=vmem, size = 0x12000, scoped, tag = 'internal scratch']
  #allocation2 [shape = 's32[1]{0}', space=sflag, size = 0x4, scoped, tag = 'scoped memory for _blur_grouped.1']
  #allocation3 [shape = 'u8[512]{0}', space=smem, size = 0x200, scoped, tag = 'prefetched SMEM operand 0']
  %s0 = inlined_call_operand.vmem [shape: s32[3], index: 0, kind: input, shape index: {}]
  %s1 = inlined_call_operand.vmem [shape: bf16[8,16,16], index: 1, kind: input, shape index: {}]
  %s2 = inlined_call_operand.vmem [shape: bf16[8,128,128], index: 2, kind: input, shape index: {}]
  %s3 = inlined_call_operand.vmem [shape: f32[3,16,128], index: 3, kind: input, shape index: {}]
  %s4 = inlined_call_operand.vmem [shape: f32[3,16,128], index: 4, kind: output, shape index: {}]
  %s5 = sld [smem:[#allocation0]]
  $region45: #{_blur_grouped.1} parent=0
    _
  %s7 = ssub.s32 1, %s5
  %s8 = scalar_select 0, %s7, %s5
  %s9 = sshll.u32 %s0, 4
  %s10 = int_to_ptr.vmem [resolvable:$true] %s9
  %12 = dma.vmem_to_smem %s10, 16, [#allocation3], [#allocation2]
  %13 = dma.done [#allocation2], 16
  %14 = sfence
  loop: start=0, step=1, limit=5
  $region2: #{_blur_grouped.1} parent=0 // loop_pre_header
    _
  $region3: #{_blur_grouped.1} parent=0 // loop_header
    %s16 = sphi 0, %s20
    %p17 = scmp.ge.s32.totalorder %s16, 5
    %s28 = sphi 0, %s30
    %s31 = sphi 0, %s28
    %s32 = sphi 0, %s31
    %s48 = sphi 0, %s32
    %s56 = sphi 0, %s58
    %s59 = sphi 0, %s56
    %s60 = sphi 0, %s59
    %s76 = sphi 0, %s60
    %s82 = sphi 0, %s84
    %s85 = sphi 0, %s82
    %s86 = sphi 0, %s85
    %s102 = sphi 0, %s86
    %s108 = sphi 0, %s110
    %s111 = sphi 0, %s108
    %s112 = sphi 0, %s111
    %s128 = sphi 0, %s112
  $region4: #{_blur_grouped.1} parent=0 // loop_header_branch
    %19 = sbr.rel (%p17) target = $region8
  $region5: #{_blur_grouped.1} parent=0 // loop_body
    %s21 = ssub.s32 %s16, 1
    %s22 = ssub.s32 %s16, 2
    %s23 = sadd.s32 %s16, 1
    %s24 = sld [smem:[#allocation3 + %s16]]
    %s25 = sld [smem:[#allocation3 + %s23]]
    %s26 = ssub.s32 %s24, %s25
    %p27 = scmp.eq.s32.totalorder %s26, 0
    %s29 = sadd.s32 %s28, 1
    %s30 = scalar_select %p27, %s28, %s29
    %p33 = pneg %p27
    %p34 = scmp.eq.s32.totalorder %s16, 2
    %p35 = por %p33, %p34
    %p36 = scmp.ne.s32.totalorder %s28, %s31
    %p37 = scmp.eq.s32.totalorder %s16, 0
    %p38 = por %p36, %p37
    %p39 = scmp.ne.s32.totalorder %s28, %s31
    %p40 = scmp.eq.s32.totalorder %s21, 2
    %p41 = por %p39, %p40
    %p42 = scmp.ne.s32.totalorder %s31, %s32
    %p43 = scmp.eq.s32.totalorder %s21, 0
    %p44 = por %p42, %p43
    %p45 = scmp.ne.s32.totalorder %s31, %s32
    %p46 = scmp.eq.s32.totalorder %s22, 2
    %p47 = por %p45, %p46
    %p49 = scmp.ne.s32.totalorder %s32, %s48
    %p50 = scmp.eq.s32.totalorder %s22, 0
    %p51 = por %p49, %p50
    %s52 = sld [smem:[#allocation3 + %s16]]
    %s53 = sld [smem:[#allocation3 + %s23]]
    %s54 = ssub.s32 %s52, %s53
    %p55 = scmp.eq.s32.totalorder %s54, 0
    %s57 = sadd.s32 %s56, 1
    %s58 = scalar_select %p55, %s56, %s57
    %p61 = pneg %p55
    %p62 = scmp.eq.s32.totalorder %s16, 2
    %p63 = por %p61, %p62
    %p64 = scmp.ne.s32.totalorder %s56, %s59
    %p65 = scmp.eq.s32.totalorder %s16, 0
    %p66 = por %p64, %p65
    %p67 = scmp.ne.s32.totalorder %s56, %s59
    %p68 = scmp.eq.s32.totalorder %s21, 2
    %p69 = por %p67, %p68
    %p70 = scmp.ne.s32.totalorder %s59, %s60
    %p71 = scmp.eq.s32.totalorder %s21, 0
    %p72 = por %p70, %p71
    %p73 = scmp.ne.s32.totalorder %s59, %s60
    %p74 = scmp.eq.s32.totalorder %s22, 2
    %p75 = por %p73, %p74
    %p77 = scmp.ne.s32.totalorder %s60, %s76
    %p78 = scmp.eq.s32.totalorder %s22, 0
    %p79 = por %p77, %p78
    %s80 = ssub.s32 %s16, %s23
    %p81 = scmp.eq.s32.totalorder %s80, 0
    %s83 = sadd.s32 %s82, 1
    %s84 = scalar_select %p81, %s82, %s83
    %p87 = pneg %p81
    %p88 = scmp.eq.s32.totalorder %s16, 2
    %p89 = por %p87, %p88
    %p90 = scmp.ne.s32.totalorder %s82, %s85
    %p91 = scmp.eq.s32.totalorder %s16, 0
    %p92 = por %p90, %p91
    %p93 = scmp.ne.s32.totalorder %s82, %s85
    %p94 = scmp.eq.s32.totalorder %s21, 2
    %p95 = por %p93, %p94
    %p96 = scmp.ne.s32.totalorder %s85, %s86
    %p97 = scmp.eq.s32.totalorder %s21, 0
    %p98 = por %p96, %p97
    %p99 = scmp.ne.s32.totalorder %s85, %s86
    %p100 = scmp.eq.s32.totalorder %s22, 2
    %p101 = por %p99, %p100
    %p103 = scmp.ne.s32.totalorder %s86, %s102
    %p104 = scmp.eq.s32.totalorder %s22, 0
    %p105 = por %p103, %p104
    %s106 = ssub.s32 %s16, %s23
    %p107 = scmp.eq.s32.totalorder %s106, 0
    %s109 = sadd.s32 %s108, 1
    %s110 = scalar_select %p107, %s108, %s109
    %p113 = pneg %p107
    %p114 = scmp.eq.s32.totalorder %s16, 2
    %p115 = por %p113, %p114
    %p116 = scmp.ne.s32.totalorder %s108, %s111
    %p117 = scmp.eq.s32.totalorder %s16, 0
    %p118 = por %p116, %p117
    %p119 = scmp.ne.s32.totalorder %s108, %s111
    %p120 = scmp.eq.s32.totalorder %s21, 2
    %p121 = por %p119, %p120
    %p122 = scmp.ne.s32.totalorder %s111, %s112
    %p123 = scmp.eq.s32.totalorder %s21, 0
    %p124 = por %p122, %p123
    %p125 = scmp.ne.s32.totalorder %s111, %s112
    %p126 = scmp.eq.s32.totalorder %s22, 2
    %p127 = por %p125, %p126
    %p129 = scmp.ne.s32.totalorder %s112, %s128
    %p130 = scmp.eq.s32.totalorder %s22, 0
    %p131 = por %p129, %p130
    %p132 = scmp.le.s32.totalorder 1, %s16
    %p133 = scmp.lt.s32.totalorder %s16, 4
    %p134 = pnand %p132, %p133
    %p135 = pneg %p134
    // Predicated region
    $region9: #{_blur_grouped.1} parent=5 // pred_check
      _
    $region10: #{_blur_grouped.1} parent=5 // pred_check_branch
      %137 = sbr.rel (%p134) target = $region12
    $region11: #{_blur_grouped.1} parent=5 // pred_region
      %s138 = ssub.s32 %s16, 1
    $region12: #{_blur_grouped.1} parent=5 // pred_fallthru
      _
    %p139 = scmp.lt.s32.totalorder %s16, 3
    // Predicated region
    $region13: #{_blur_grouped.1} parent=5 // pred_check
      %p140 = pneg %p139
    $region14: #{_blur_grouped.1} parent=5 // pred_check_branch
      %142 = sbr.rel (%p140) target = $region16
    $region15: #{_blur_grouped.1} parent=5 // pred_region
      // Predicated region
      $region17: #{_blur_grouped.1} parent=15 // pred_check
        %p143 = pneg %p38
      $region18: #{_blur_grouped.1} parent=15 // pred_check_branch
        %145 = sbr.rel (%p143) target = $region20
      $region19: #{_blur_grouped.1} parent=15 // pred_region
        %s146 = sld [smem:[#allocation3 + %s16]]
        %p147 = scmp.lt.s32.totalorder %s146, 7
        %s148 = scalar_select %p147, %s146, 7
        %s149 = smul.addr %s148, 2
        %s150 = smul.addr %s149, 4
        %s151 = scalar_lea.vmem %s1, %s150
        %s152 = sld [smem:[#allocation3 + %s16]]
      $region20: #{_blur_grouped.1} parent=15 // pred_fallthru
        _
      // Predicated region
      $region21: #{_blur_grouped.1} parent=15 // pred_check
        %p153 = pneg %p66
      $region22: #{_blur_grouped.1} parent=15 // pred_check_branch
        %155 = sbr.rel (%p153) target = $region24
      $region23: #{_blur_grouped.1} parent=15 // pred_region
        %s156 = sld [smem:[#allocation3 + %s16]]
        %p157 = scmp.lt.s32.totalorder %s156, 7
        %s158 = scalar_select %p157, %s156, 7
        %s159 = smul.addr %s158, 16
        %s160 = smul.addr %s159, 4
        %s161 = scalar_lea.vmem %s2, %s160
        %s162 = sld [smem:[#allocation3 + %s16]]
      $region24: #{_blur_grouped.1} parent=15 // pred_fallthru
        _
      // Predicated region
      $region25: #{_blur_grouped.1} parent=15 // pred_check
        %p163 = pneg %p92
      $region26: #{_blur_grouped.1} parent=15 // pred_check_branch
        %165 = sbr.rel (%p163) target = $region28
      $region27: #{_blur_grouped.1} parent=15 // pred_region
        %p166 = scmp.lt.s32.totalorder %s16, 2
        %s167 = scalar_select %p166, %s16, 2
        %s168 = smul.addr %s167, 2
        %s169 = smul.addr %s168, 8
        %s170 = scalar_lea.vmem %s3, %s169
      $region28: #{_blur_grouped.1} parent=15 // pred_fallthru
        _
    $region16: #{_blur_grouped.1} parent=5 // pred_fallthru
      _
    %p171 = scmp.le.s32.totalorder 1, %s16
    %p172 = scmp.lt.s32.totalorder %s16, 4
    %p173 = pnand %p171, %p172
    %p174 = pneg %p173
    // Predicated region
    $region29: #{_blur_grouped.1} parent=5 // pred_check
      _
    $region30: #{_blur_grouped.1} parent=5 // pred_check_branch
      %176 = sbr.rel (%p173) target = $region32
    $region31: #{_blur_grouped.1} parent=5 // pred_region
      %s177 = ssub.s32 %s16, 1
      %s178 = sld [smem:[#allocation3 + %s21]]
      %p179 = scmp.lt.s32.totalorder %s178, 7
      %s180 = scalar_select %p179, %s178, 7
      %s181 = smul.addr %s180, 2
      %s182 = smul.addr %s181, 4
      %s183 = scalar_lea.vmem %s1, %s182
      %p184 = pneg %p44
      %p185 = pneg %p41
      %s186 = sld [smem:[#allocation3 + %s21]]
      %p187 = scmp.lt.s32.totalorder %s186, 7
      %s188 = scalar_select %p187, %s186, 7
      %s189 = smul.addr %s188, 16
      %s190 = smul.addr %s189, 4
      %s191 = scalar_lea.vmem %s2, %s190
      %p192 = pneg %p72
      %p193 = pneg %p69
      %p194 = scmp.lt.s32.totalorder %s21, 2
      %s195 = scalar_select %p194, %s21, 2
      %s196 = smul.addr %s195, 2
      %s197 = smul.addr %s196, 8
      %s198 = scalar_lea.vmem %s3, %s197
      %p199 = pneg %p98
      %p200 = pneg %p95
      %p201 = pneg %p124
      %p202 = pneg %p121
      %p203 = scmp.lt.s32.totalorder %s21, 2
      %s204 = scalar_select %p203, %s21, 2
      %s205 = smul.addr %s204, 2
      %s206 = smul.addr %s205, 8
      %s207 = scalar_lea.vmem %s4, %s206
      %s208 = sld [smem:[#allocation3 + %s21]]
      %p209 = scmp.lt.s32.totalorder %s208, 7
      %s210 = scalar_select %p209, %s208, 7
      %s211 = smul.addr %s210, 2
      %s212 = smul.addr %s211, 4
      %s213 = scalar_lea.vmem %s1, %s212
      %s214 = sld [smem:[#allocation3 + %s21]]
      %s215 = sld [smem:[#allocation3 + %s21]]
      %p216 = scmp.lt.s32.totalorder %s215, 7
      %s217 = scalar_select %p216, %s215, 7
      %s218 = smul.addr %s217, 16
      %s219 = smul.addr %s218, 4
      %s220 = scalar_lea.vmem %s2, %s219
      %s221 = sld [smem:[#allocation3 + %s21]]
      %p222 = scmp.lt.s32.totalorder %s21, 2
      %s223 = scalar_select %p222, %s21, 2
      %s224 = smul.addr %s223, 2
      %s225 = smul.addr %s224, 8
      %s226 = scalar_lea.vmem %s3, %s225
      %p227 = scmp.lt.s32.totalorder %s21, 2
      %s228 = scalar_select %p227, %s21, 2
      %s229 = smul.addr %s228, 2
      %s230 = smul.addr %s229, 8
      %s231 = scalar_lea.vmem %s4, %s230
      %v233 = vld [vmem:[%s213] sm:$0xf]
      %v234 = vld [vmem:[%s213 + $0x4] sm:$0xf]
      %v235 = vld [vmem:[%s226] sm:$0xff]
      %v236 = vld [vmem:[%s226 + $0x8] sm:$0xff]
      %v237 = vpack.c.bf16 %v236, %v235
      %v240 = vunpack.c.l.b16 %v233
      %v241 = vunpack.c.l.b16 %v234
      %v242 = vpack.c.b16 %v241, %v240
      %vm243 = vcmask 130048
      %v245 = vsel %vm243, %v242, 0
      %247 = vmatprep.subr.bf16.mxu0 0
      %248 = vmatpush1.bf16.msra.mxu0 %v237
      %249 = vmatprep.subr.bf16.mxu0 0
      %250 = vmatpush1.bf16.msra.mxu0 0
      %251 = vmatprep.subr.bf16.mxu0 0
      %252 = vmatpush1.bf16.msra.mxu0 0
      %253 = vmatprep.subr.bf16.mxu0 0
      %254 = vmatpush1.bf16.msra.mxu0 0
      %255 = vmatprep.subr.bf16.mxu0 0
      %256 = vmatpush1.bf16.msra.mxu0 0
      %257 = vmatprep.subr.bf16.mxu0 0
      %258 = vmatpush1.bf16.msra.mxu0 0
      %259 = vmatprep.subr.bf16.mxu0 0
      %260 = vmatpush1.bf16.msra.mxu0 0
      %261 = vmatprep.subr.bf16.mxu0 0
      %262 = vmatpush1.bf16.msra.mxu0 0
      %263 = vmatprep.subr.bf16.mxu0 0
      %264 = vmatpush1.bf16.msra.mxu0 0
      %265 = vmatprep.subr.bf16.mxu0 0
      %266 = vmatpush1.bf16.msra.mxu0 0
      %267 = vmatprep.subr.bf16.mxu0 0
      %268 = vmatpush1.bf16.msra.mxu0 0
      %269 = vmatprep.subr.bf16.mxu0 0
      %270 = vmatpush1.bf16.msra.mxu0 0
      %271 = vmatprep.subr.bf16.mxu0 0
      %272 = vmatpush1.bf16.msra.mxu0 0
      %273 = vmatprep.subr.bf16.mxu0 0
      %274 = vmatpush1.bf16.msra.mxu0 0
      %275 = vmatprep.subr.bf16.mxu0 0
      %276 = vmatpush1.bf16.msra.mxu0 0
      %277 = vmatprep.subr.bf16.mxu0 0
      %278 = vmatpush1.bf16.msra.mxu0 0
      %279 = vmatprep.mubr.bf16.mxu0 0
      %280 = vmatmul.mubr.bf16.gmra.mrb[0].mxu0 %v245
      %v281 = vpop.f32.mrb[0].mxu0
      %v282 = vadd.f32 0.0, %v281
      %v283 = vpop.f32.mrb[0].mxu0
      %v284 = vpop.f32.mrb[0].mxu0
      %v285 = vadd.f32 0.0, %v284
      %v286 = vpop.f32.mrb[0].mxu0
      %287 = vdwg.mxu0
      %v288 = vpack.c.bf16 %v285, %v282
      %v289 = vld [vmem:[%s220] sm:$0xf]
      %v290 = vld [vmem:[%s220 + $0x4] sm:$0xf]
      %v291 = vld [vmem:[%s220 + $0x8] sm:$0xf]
      %v292 = vld [vmem:[%s220 + $0xc] sm:$0xf]
      %v293 = vld [vmem:[%s220 + $0x10] sm:$0xf]
      %v294 = vld [vmem:[%s220 + $0x14] sm:$0xf]
      %v295 = vld [vmem:[%s220 + $0x18] sm:$0xf]
      %v296 = vld [vmem:[%s220 + $0x1c] sm:$0xf]
      %v297 = vld [vmem:[%s220 + $0x20] sm:$0xf]
      %v298 = vld [vmem:[%s220 + $0x24] sm:$0xf]
      %v299 = vld [vmem:[%s220 + $0x28] sm:$0xf]
      %v300 = vld [vmem:[%s220 + $0x2c] sm:$0xf]
      %v301 = vld [vmem:[%s220 + $0x30] sm:$0xf]
      %v302 = vld [vmem:[%s220 + $0x34] sm:$0xf]
      %v303 = vld [vmem:[%s220 + $0x38] sm:$0xf]
      %v304 = vld [vmem:[%s220 + $0x3c] sm:$0xf]
      %v321 = vunpack.c.l.b16 %v289
      %v322 = vunpack.c.l.b16 %v290
      %v323 = vunpack.c.l.b16 %v291
      %v324 = vunpack.c.l.b16 %v292
      %v325 = vunpack.c.l.b16 %v293
      %v326 = vunpack.c.l.b16 %v294
      %v327 = vunpack.c.l.b16 %v295
      %v328 = vunpack.c.l.b16 %v296
      %v329 = vunpack.c.l.b16 %v297
      %v330 = vunpack.c.l.b16 %v298
      %v331 = vunpack.c.l.b16 %v299
      %v332 = vunpack.c.l.b16 %v300
      %v333 = vunpack.c.l.b16 %v301
      %v334 = vunpack.c.l.b16 %v302
      %v335 = vunpack.c.l.b16 %v303
      %v336 = vunpack.c.l.b16 %v304
      %v337 = vpack.c.b16 %v322, %v321
      %v338 = vpack.c.b16 %v324, %v323
      %v339 = vpack.c.b16 %v326, %v325
      %v340 = vpack.c.b16 %v328, %v327
      %v341 = vpack.c.b16 %v330, %v329
      %v342 = vpack.c.b16 %v332, %v331
      %v343 = vpack.c.b16 %v334, %v333
      %v344 = vpack.c.b16 %v336, %v335
      %353 = vmatprep.subr.bf16.mxu0 0
      %354 = vmatpush1.bf16.msra.mxu0 %v337
      %355 = vmatprep.subr.bf16.mxu0 0
      %356 = vmatpush1.bf16.msra.mxu0 %v338
      %357 = vmatprep.subr.bf16.mxu0 0
      %358 = vmatpush1.bf16.msra.mxu0 %v339
      %359 = vmatprep.subr.bf16.mxu0 0
      %360 = vmatpush1.bf16.msra.mxu0 %v340
      %361 = vmatprep.subr.bf16.mxu0 0
      %362 = vmatpush1.bf16.msra.mxu0 %v341
      %363 = vmatprep.subr.bf16.mxu0 0
      %364 = vmatpush1.bf16.msra.mxu0 %v342
      %365 = vmatprep.subr.bf16.mxu0 0
      %366 = vmatpush1.bf16.msra.mxu0 %v343
      %367 = vmatprep.subr.bf16.mxu0 0
      %368 = vmatpush1.bf16.msra.mxu0 %v344
      %369 = vmatprep.subr.bf16.mxu0 0
      %370 = vmatpush1.bf16.msra.mxu0 0
      %371 = vmatprep.subr.bf16.mxu0 0
      %372 = vmatpush1.bf16.msra.mxu0 0
      %373 = vmatprep.subr.bf16.mxu0 0
      %374 = vmatpush1.bf16.msra.mxu0 0
      %375 = vmatprep.subr.bf16.mxu0 0
      %376 = vmatpush1.bf16.msra.mxu0 0
      %377 = vmatprep.subr.bf16.mxu0 0
      %378 = vmatpush1.bf16.msra.mxu0 0
      %379 = vmatprep.subr.bf16.mxu0 0
      %380 = vmatpush1.bf16.msra.mxu0 0
      %381 = vmatprep.subr.bf16.mxu0 0
      %382 = vmatpush1.bf16.msra.mxu0 0
      %383 = vmatprep.subr.bf16.mxu0 0
      %384 = vmatpush1.bf16.msra.mxu0 0
      %385 = vmatprep.mubr.bf16.mxu0 0
      %386 = vmatmul.mubr.bf16.gmra.mrb[0].mxu0 %v288
      %v387 = vpop.f32.mrb[0].mxu0
      %v388 = vadd.f32 0.0, %v387
      %v389 = vpop.f32.mrb[0].mxu0
      %v390 = vpop.f32.mrb[0].mxu0
      %v391 = vadd.f32 0.0, %v390
      %v392 = vpop.f32.mrb[0].mxu0
      %393 = vdwg.mxu0
      %394 = vst [vmem:[%s231] sm:$0xff] %v388
      %395 = vst [vmem:[%s231 + $0x8] sm:$0xff] %v391
      %p396 = scmp.lt.s32.totalorder %s21, 2
      %s397 = scalar_select %p396, %s21, 2
      %s398 = smul.addr %s397, 2
      %s399 = smul.addr %s398, 8
      %s400 = scalar_lea.vmem %s4, %s399
      // Predicated region
      $region33: #{_blur_grouped.1} parent=31 // pred_check
        %p401 = pneg %p121
      $region34: #{_blur_grouped.1} parent=31 // pred_check_branch
        %403 = sbr.rel (%p401) target = $region36
      $region35: #{_blur_grouped.1} parent=31 // pred_region
        _
      $region36: #{_blur_grouped.1} parent=31 // pred_fallthru
        _
    $region32: #{_blur_grouped.1} parent=5 // pred_fallthru
      _
    %p404 = scmp.le.s32.totalorder 2, %s16
    // Predicated region
    $region37: #{_blur_grouped.1} parent=5 // pred_check
      %p405 = pneg %p404
    $region38: #{_blur_grouped.1} parent=5 // pred_check_branch
      %407 = sbr.rel (%p405) target = $region40
    $region39: #{_blur_grouped.1} parent=5 // pred_region
      %s408 = ssub.s32 %s16, 2
      // Predicated region
      $region41: #{_blur_grouped.1} parent=39 // pred_check
        %p409 = pneg %p127
      $region42: #{_blur_grouped.1} parent=39 // pred_check_branch
        %411 = sbr.rel (%p409) target = $region44
      $region43: #{_blur_grouped.1} parent=39 // pred_region
        %p412 = scmp.lt.s32.totalorder %s22, 2
        %s413 = scalar_select %p412, %s22, 2
        %s414 = smul.addr %s413, 2
        %s415 = smul.addr %s414, 8
        %s416 = scalar_lea.vmem %s4, %s415
      $region44: #{_blur_grouped.1} parent=39 // pred_fallthru
        _
    $region40: #{_blur_grouped.1} parent=5 // pred_fallthru
      _
  $region6: #{_blur_grouped.1} parent=0 // loop_footer
    %s20 = sadd.s32 1, %s16
  $region7: #{_blur_grouped.1} parent=0 // loop_footer_branch
    %15 = sbr.rel target = $region3
  $region8: #{_blur_grouped.1} parent=0 // loop_exit
    _

</llo_original>
